<compile_context>
chip_gen: v7x
topology: tpu7x:2x2x1
jax: 0.10.0
libtpu: 0.0.40
codegen_flags: <defaults>
</compile_context>

<pallas_src>
import functools

import jax
import jax.numpy as jnp
from jax.experimental import pallas as pl
from jax.experimental.pallas import tpu as pltpu


@functools.lru_cache(maxsize=None)
def _roll_is_np_style() -> bool:
    """Pin pltpu.roll's lane-rotation direction with a tiny probe kernel.

    True  -> pltpu.roll(x, 1, axis=-1)[..., i] == x[..., i - 1] (np.roll style)
    False -> pltpu.roll(x, 1, axis=-1)[..., i] == x[..., i + 1]
    The im2col tap construction below needs the exact direction; a 4 KiB
    one-off probe is cheaper than getting it silently wrong.
    """
    def probe(x_ref, o_ref):
        o_ref[...] = pltpu.roll(x_ref[...], 1, axis=1)

    x = jax.lax.broadcasted_iota(jnp.int32, (8, 128), 1)
    y = pl.pallas_call(
        probe, out_shape=jax.ShapeDtypeStruct((8, 128), jnp.int32))(x)
    return int(y[0, 1]) == 0


def _pick_batch_tile(n, hw, target_lanes=512, max_lanes=2048):
    """Largest divisor of n keeping the fused lane width b*hw modest, stopping
    once the >=512-lane target (measured HBM-roofline guidance) is met."""
    best = 1
    for cand in range(1, n + 1):
        if n % cand:
            continue
        if cand * hw > max_lanes and cand > 1:
            break
        best = cand
        if best * hw >= target_lanes:
            break
    return best


def _residual_block_kernel(x_ref, w1_ref, b1_ref, w2_ref, b2_ref, out_ref,
                           *, H, W, B, mxu_dtype, roll_np):
    # x_ref  : (B, C, H*W)     f32   B images, channels x flattened spatial
    # w*_ref : (Cout, 9*Cin)   bf16/f32, columns ordered (ky, kx, cin)
    # b*_ref : (Cout, 1)       f32
    # out_ref: (B, Cout, H*W)  f32
    HW = H * W
    LB = B * HW

    # Validity masks implementing the 3x3 zero padding: the tap reading pixel
    # (h+dy, w+dx) is zeroed wherever that pixel falls outside the image.
    # They also kill the row/image wrap-around of the lane rotations.
    pos = jax.lax.broadcasted_iota(jnp.int32, (1, LB), 1) % HW
    row = pos // W
    col = pos % W
    vrow = {-1: row != 0, 0: None, 1: row != (H - 1)}
    vcol = {-1: col != 0, 0: None, 1: col != (W - 1)}
    masks = {}
    for dy in (-1, 0, 1):
        for dx in (-1, 0, 1):
            mr, mc = vrow[dy], vcol[dx]
            masks[(dy, dx)] = (mr if mc is None else
                               mc if mr is None else mr & mc)

    def conv3x3(imgs, w_ref, b_ref):
        # imgs: B resident (Cin, HW) f32 arrays.  Build the im2col operand
        # (9*Cin, B*HW) via lane rotations + masks, then ONE MXU matmul.
        taps = []
        for dy in (-1, 0, 1):
            for dx in (-1, 0, 1):
                s = dy * W + dx                       # tap[l] = img[l + s]
                if s == 0:
                    parts = imgs
                else:
                    shift = (-s) % HW if roll_np else s % HW
                    parts = [pltpu.roll(img, shift, axis=1) for img in imgs]
                t = parts[0] if B == 1 else jnp.concatenate(parts, axis=1)
                m = masks[(dy, dx)]
                if m is not None:
                    t = jnp.where(m, t, 0.0)
                taps.append(t)
        patches = jnp.concatenate(taps, axis=0).astype(mxu_dtype)  # (9Cin, LB)
        acc = jnp.dot(w_ref[...].astype(mxu_dtype), patches,
                      preferred_element_type=jnp.float32)          # (Cout, LB)
        return acc + b_ref[...]                                    # f32 epilogue

    imgs = [x_ref[b] for b in range(B)]                            # (C, HW) f32

    # ---- conv1 + bias + relu, entirely in VMEM/vregs ----
    h1 = jnp.maximum(conv3x3(imgs, w1_ref, b1_ref), 0.0)           # (C, LB)
    h1_imgs = [h1[:, b * HW:(b + 1) * HW] for b in range(B)]       # 128-aligned

    # ---- conv2 + bias + residual add + relu ----
    h2 = conv3x3(h1_imgs, w2_ref, b2_ref)                          # (C, LB)
    for b in range(B):
        out_ref[b] = jnp.maximum(h2[:, b * HW:(b + 1) * HW] + imgs[b],
                                 0.0).astype(out_ref.dtype)


def residual_block_forward(x_nchw, w1, b1, w2, b2, *, use_bf16_mxu=True):
    """x_nchw: (N, C, H, W) f32; w1/w2 HWIO (3, 3, Cin, Cout); returns NCHW."""
    N, C, H, W = x_nchw.shape
    cin, cout = w1.shape[2], w1.shape[3]
    # Residual path of ResidualBlock (stride=1, downsample=None) needs cin==cout.
    assert cin == C and cout == C, (cin, cout, C)
    HW = H * W

    wdt = jnp.bfloat16 if use_bf16_mxu else jnp.float32
    x_flat = x_nchw.reshape(N, C, HW)            # free: NCHW is already (C, spatial)
    w1t = jnp.transpose(w1.reshape(9 * C, C)).astype(wdt)  # (Cout, 9Cin) (ky,kx,cin)
    w2t = jnp.transpose(w2.reshape(9 * C, C)).astype(wdt)
    b1c = b1.reshape(C, 1).astype(jnp.float32)
    b2c = b2.reshape(C, 1).astype(jnp.float32)

    B = _pick_batch_tile(N, HW)                  # images fused per grid step
    grid = (N // B,)

    flops = 2 * N * (2 * HW * 9 * C * C)         # two 3x3 convs
    bytes_accessed = (2 * N * C * HW * 4
                      + 2 * 9 * C * C * jnp.dtype(wdt).itemsize + 2 * C * 4)

    kernel = functools.partial(_residual_block_kernel, H=H, W=W, B=B,
                               mxu_dtype=wdt, roll_np=_roll_is_np_style())

    out_flat = pl.pallas_call(
        kernel,
        grid=grid,
        in_specs=[
            pl.BlockSpec((B, C, HW), lambda n: (n, 0, 0)),
            pl.BlockSpec((C, 9 * C), lambda n: (0, 0)),
            pl.BlockSpec((C, 1), lambda n: (0, 0)),
            pl.BlockSpec((C, 9 * C), lambda n: (0, 0)),
            pl.BlockSpec((C, 1), lambda n: (0, 0)),
        ],
        out_specs=pl.BlockSpec((B, C, HW), lambda n: (n, 0, 0)),
        out_shape=jax.ShapeDtypeStruct((N, C, HW), jnp.float32),
        compiler_params=pltpu.CompilerParams(
            dimension_semantics=("parallel",)),
        cost_estimate=pl.CostEstimate(flops=flops, transcendentals=0,
                                      bytes_accessed=bytes_accessed),
    )(x_flat, w1t, b1c, w2t, b2c)

    return out_flat.reshape(N, C, H, W)


def _ref_forward(x, w1, b1, w2, b2):
    # Pure-JAX reference (NCHW, HWIO) for correctness check.
    dn = ("NCHW", "HWIO", "NCHW")
    out = jax.lax.conv_general_dilated(x, w1, (1, 1), "SAME", dimension_numbers=dn)
    out = jnp.maximum(out + b1.reshape(1, -1, 1, 1), 0.0)
    out = jax.lax.conv_general_dilated(out, w2, (1, 1), "SAME", dimension_numbers=dn)
    out = out + b2.reshape(1, -1, 1, 1) + x
    return jnp.maximum(out, 0.0)


if __name__ == "__main__":
    key = jax.random.PRNGKey(0)
    k1, k2, k3, k4, kx = jax.random.split(key, 5)

    N, C, H, W = 2, 8, 16, 16  # in_channels == out_channels (residual add)
    x = jax.random.normal(kx, (N, C, H, W), jnp.float32)
    scale = 1.0 / (3 * 3 * C) ** 0.5
    w1 = jax.random.normal(k1, (3, 3, C, C), jnp.float32) * scale
    b1 = jax.random.normal(k2, (C,), jnp.float32) * 0.1
    w2 = jax.random.normal(k3, (3, 3, C, C), jnp.float32) * scale
    b2 = jax.random.normal(k4, (C,), jnp.float32) * 0.1

    ref = _ref_forward(x, w1, b1, w2, b2)

    # 1) f32-MXU config: exact check of the tap/mask/weight-layout logic.
    out_f32 = jax.block_until_ready(
        residual_block_forward(x, w1, b1, w2, b2, use_bf16_mxu=False))
    assert out_f32.shape == (N, C, H, W), out_f32.shape
    assert jnp.allclose(out_f32, ref, atol=1e-4, rtol=1e-4), float(
        jnp.max(jnp.abs(out_f32 - ref)))

    # 2) Default bf16-MXU config (f32 accumulation + f32 epilogue); looser
    #    tolerance only because the reference conv runs fully in f32.
    out = jax.block_until_ready(residual_block_forward(x, w1, b1, w2, b2))
    assert out.shape == (N, C, H, W), out.shape
    assert jnp.allclose(out, ref, atol=5e-2, rtol=5e-2), float(
        jnp.max(jnp.abs(out - ref)))

    print("KERNEL_OK")
</pallas_src>

<mosaic_0001>
module attributes {stable_mosaic.version = 11 : i64} {
  func.func @probe(%arg0: memref<8x128xi32, #tpu.memory_space<vmem>>, %arg1: memref<8x128xi32, #tpu.memory_space<vmem>>) attributes {dimension_semantics = [], scalar_prefetch = 0 : i64, scratch_operands = 0 : i64, tpu.core_type = #tpu.core_type<tc>} {
    %c0 = arith.constant 0 : index
    %c0_0 = arith.constant 0 : index
    %0 = vector.load %arg0[%c0, %c0_0] : memref<8x128xi32, #tpu.memory_space<vmem>>, vector<8x128xi32>
    %c1_i32 = arith.constant 1 : i32
    %1 = tpu.dynamic_rotate %0 by %c1_i32 dim 1 : vector<8x128xi32>, i32 -> vector<8x128xi32>
    %c0_1 = arith.constant 0 : index
    %c0_2 = arith.constant 0 : index
    %2 = vector.load %arg1[%c0_1, %c0_2] : memref<8x128xi32, #tpu.memory_space<vmem>>, vector<8x128xi32>
    tpu.vector_store %arg1[%c0_1, %c0_2], %1 {strides = array<i32>} : memref<8x128xi32, #tpu.memory_space<vmem>>, vector<8x128xi32>,
    return
  }
}

</mosaic_0001>

<llo_original>
// kernel: tpu_custom_call.1
$region0: #{tpu_custom_call.1}
  #allocation0 [shape = 'u32[]', space=smem, size = 0x4, offset = 0x4, fixed_abs, tag = 'smem constant byte address 0x4 - core index']
  #allocation1 [shape = 'u32[144,128]{1,0:T(1,128)}', space=vmem, size = 0x12000, scoped, tag = 'internal scratch']
  %s0 = inlined_call_operand.hbm [shape: s32[8,128], index: 0, kind: input, shape index: {}]
  %s1 = inlined_call_operand.hbm [shape: s32[8,128], index: 1, kind: output, shape index: {}]
  %s2 = sld [smem:[#allocation0]]
  $region18: #{tpu_custom_call.1} parent=0
    _
  %s4 = ssub.s32 1, %s2
  %s5 = scalar_select 0, %s4, %s2
  $region1: #{tpu_custom_call.1} parent=0
    #allocation2 [shape = 'u8[4096]{0}', space=vmem, size = 0x1000, scoped, tag = 'input window, operand 0, single buffered']
    #allocation3 [shape = 's32[1]{0}', space=sflag, size = 0x4, scoped, tag = 'scoped memory for tpu_custom_call.1']
    #allocation4 [shape = 's32[1]{0}', space=sflag, size = 0x4, scoped, tag = 'scoped memory for tpu_custom_call.1']
    #allocation5 [shape = 'u8[4096]{0}', space=vmem, size = 0x1000, scoped, tag = 'output window, operand 0, single buffered']
    %6 = vsyncpa [#allocation3], 0
    %7 = vsyncpa [#allocation4], 0
    // Predicated region
    $region2: #{tpu_custom_call.1} parent=1 // pred_check
      _
    $region3: #{tpu_custom_call.1} parent=1 // pred_check_branch
      %9 = sbr.rel (0) target = $region5
    $region4: #{tpu_custom_call.1} parent=1 // pred_region
      %s11 = ssub.s32 128, 128
      %12 = vsyncadd [#allocation3], %s11
      %s14 = sshll.u32 [#allocation2], 4
      %s15 = int_to_ptr.vmem [resolvable:$true] %s14
      %17 = dma.hbm_to_vmem [thread:$0]  %s0, 128, %s15, [#allocation3]
    $region5: #{tpu_custom_call.1} parent=1 // pred_fallthru
      _
    // Predicated region
    $region6: #{tpu_custom_call.1} parent=1 // pred_check
      _
    $region7: #{tpu_custom_call.1} parent=1 // pred_check_branch
      %19 = sbr.rel (0) target = $region9
    $region8: #{tpu_custom_call.1} parent=1 // pred_region
      %20 = dma.done [#allocation3], 128
    $region9: #{tpu_custom_call.1} parent=1 // pred_fallthru
      _
    %v21 = vld [vmem:[#allocation2] sm:$0xff]
    %22 = vrot.lane.b32.xlu0 %v21, 1
    %v23 = vpop.permute.xlu0 %22
    %24 = vst [vmem:[#allocation5] sm:$0xff] %v23
    // Predicated region
    $region10: #{tpu_custom_call.1} parent=1 // pred_check
      _
    $region11: #{tpu_custom_call.1} parent=1 // pred_check_branch
      %26 = sbr.rel (0) target = $region13
    $region12: #{tpu_custom_call.1} parent=1 // pred_region
      %s28 = ssub.s32 128, 128
      %29 = vsyncadd [#allocation4], %s28
      %s31 = sshll.u32 [#allocation5], 4
      %s32 = int_to_ptr.vmem [resolvable:$true] %s31
      %34 = dma.vmem_to_hbm [thread:$0]  %s32, 128, %s1, [#allocation4]
    $region13: #{tpu_custom_call.1} parent=1 // pred_fallthru
      _
    // Predicated region
    $region14: #{tpu_custom_call.1} parent=1 // pred_check
      _
    $region15: #{tpu_custom_call.1} parent=1 // pred_check_branch
      %36 = sbr.rel (0) target = $region17
    $region16: #{tpu_custom_call.1} parent=1 // pred_region
      %37 = dma.done [#allocation4], 128
    $region17: #{tpu_custom_call.1} parent=1 // pred_fallthru
      _
    %38 = vsyncpa [#allocation3], 1
    %39 = vsyncpa [#allocation4], 1

</llo_original>
